<compile_context>
chip_gen: v6e
topology: v6e:2x2x1
jax: 0.10.0
libtpu: 0.0.40
codegen_flags: <defaults>
</compile_context>

<pallas_src>
import jax
import jax.numpy as jnp
from jax.experimental import pallas as pl
from jax.experimental.pallas import tpu as pltpu


_SMEM_SPEC = pl.BlockSpec(memory_space=pltpu.MemorySpace.SMEM)

# Per-buffer element budget (~3 MiB of f32 for a (3, TILE_W, H) slab) so that
# input + output double buffers stay well under v7x's scoped-VMEM default.
_TILE_ELEM_BUDGET = 1 << 18


def _pick_tile(n: int, mult: int, max_tile: int) -> int:
    """Largest divisor of n that is a multiple of `mult` and <= max_tile.
    Falls back to n (full extent, which is always a legal block dim)."""
    if n <= max_tile:
        return n
    t = (max_tile // mult) * mult
    while t >= mult:
        if n % t == 0:
            return t
        t -= mult
    return n


# ---------------------------------------------------------------------------
# Kernels
# ---------------------------------------------------------------------------
def _make_kernel_3d(split: int):
    """Lane-dense path: blocks are (3, TILE_W, H), H on lanes, TILE_W on sublanes."""

    def kernel(x_ref, w_ref, b_ref, o_ref):
        _, _, H = x_ref.shape
        # Half-plane mask along the 2nd spatial axis (lanes): 1.0 where h < split.
        h_idx = jax.lax.broadcasted_iota(jnp.int32, (1, H), 1)
        m = (h_idx < split).astype(jnp.float32)                  # (1, H)
        not_m = 1.0 - m

        xs = [x_ref[c] for c in range(3)]                        # each (TILE_W, H)
        for o in range(3):
            acc = None
            for c in range(3):
                # Select the weight per lane instead of masking the data:
                # virtual channels 0:3 live in the first half of the axis,
                # channels 3:6 in the second half.
                w_eff = w_ref[o, c] * m + w_ref[o, c + 3] * not_m   # (1, H)
                term = xs[c] * w_eff                                # (TILE_W, H)
                acc = term if acc is None else acc + term
            o_ref[o] = acc + b_ref[o]

    return kernel


def _flat_kernel(x_ref, m_ref, w_ref, b_ref, o_ref):
    """Fallback path (H < 128 or ragged): blocks are (3, TILE_P), P = W*H on lanes.
    The half-plane mask is precomputed in the wrapper (no vector modulo)."""
    x = x_ref[...]                                               # (3, TILE_P)
    m = m_ref[...]                                               # (1, TILE_P), 1.0 = first half
    not_m = 1.0 - m
    rows = []
    for o in range(3):
        acc = None
        for c in range(3):
            w_eff = w_ref[o, c] * m + w_ref[o, c + 3] * not_m    # (1, TILE_P)
            term = x[c:c + 1, :] * w_eff
            acc = term if acc is None else acc + term
        rows.append(acc + b_ref[o])
    o_ref[...] = jnp.concatenate(rows, axis=0)                   # (3, TILE_P)


# ---------------------------------------------------------------------------
# Wrappers
# ---------------------------------------------------------------------------
def unet_front_conv_forward_cwh(x_cwh, weight, bias, *, tile_w=None, tile_p=None):
    """Channel-major entry point: x (3, W, H) f32 -> (3, W, H) f32."""
    C, W, H = x_cwh.shape
    assert C == 3, "module expects 3 input channels"
    split = W // 2                      # reference splits the 2nd axis at w/2
    P = W * H

    x_cwh = x_cwh.astype(jnp.float32)
    w = weight.astype(jnp.float32)      # (3, 6)
    b = bias.astype(jnp.float32)        # (3,)

    compiler_params = pltpu.CompilerParams(
        dimension_semantics=("parallel",),     # shards across v7x's 2 TCs
        vmem_limit_bytes=32 * 1024 * 1024,
    )

    if H % 128 == 0:
        # Lane-dense (3, TILE_W, H) blocks.
        if tile_w is None:
            tile_w = _pick_tile(W, 8, max(8, _TILE_ELEM_BUDGET // H))
        assert W % tile_w == 0 and (tile_w % 8 == 0 or tile_w == W)
        cost = pl.CostEstimate(flops=18 * P, transcendentals=0, bytes_accessed=24 * P)
        return pl.pallas_call(
            _make_kernel_3d(split),
            out_shape=jax.ShapeDtypeStruct((3, W, H), jnp.float32),
            grid=(W // tile_w,),
            in_specs=[
                pl.BlockSpec((3, tile_w, H), lambda i: (0, i, 0)),
                _SMEM_SPEC,   # weight (3, 6) as scalars
                _SMEM_SPEC,   # bias   (3,)  as scalars
            ],
            out_specs=pl.BlockSpec((3, tile_w, H), lambda i: (0, i, 0)),
            compiler_params=compiler_params,
            cost_estimate=cost,
        )(x_cwh, w, b)

    # Fallback: flatten spatial to lanes; precompute the half-plane mask once.
    x_cp = x_cwh.reshape(3, P)
    col = jnp.arange(P, dtype=jnp.int32) % H
    mask = (col < split).astype(jnp.float32).reshape(1, P)
    if tile_p is None:
        tile_p = _pick_tile(P, 128, _TILE_ELEM_BUDGET)
    assert P % tile_p == 0 and (tile_p % 128 == 0 or tile_p == P)
    cost = pl.CostEstimate(flops=18 * P, transcendentals=0, bytes_accessed=28 * P)
    out_cp = pl.pallas_call(
        _flat_kernel,
        out_shape=jax.ShapeDtypeStruct((3, P), jnp.float32),
        grid=(P // tile_p,),
        in_specs=[
            pl.BlockSpec((3, tile_p), lambda i: (0, i)),
            pl.BlockSpec((1, tile_p), lambda i: (0, i)),
            _SMEM_SPEC,
            _SMEM_SPEC,
        ],
        out_specs=pl.BlockSpec((3, tile_p), lambda i: (0, i)),
        compiler_params=compiler_params,
        cost_estimate=cost,
    )(x_cp, mask, w, b)
    return out_cp.reshape(3, W, H)


def unet_front_conv_forward(x_whc, weight, bias, *, tile_w=None, tile_p=None):
    """x_whc: (W, H, 3) f32; weight: (3, 6); bias: (3,) -> (3, W, H) f32.

    NOTE: the (2,0,1) transpose below is a separate XLA pass over the whole
    image (~doubles end-to-end HBM traffic of this memory-bound op).  Feed
    channel-major data to `unet_front_conv_forward_cwh` directly when the
    producer allows it.
    """
    W, H, C = x_whc.shape
    assert C == 3
    x_cwh = jnp.transpose(x_whc, (2, 0, 1))
    return unet_front_conv_forward_cwh(x_cwh, weight, bias, tile_w=tile_w, tile_p=tile_p)


# ---------------------------------------------------------------------------
# Pure-JAX reference of the intended semantics (sanity check only)
# ---------------------------------------------------------------------------
def _reference(x_whc, weight, bias):
    W, H, C = x_whc.shape
    split = W // 2
    y = jnp.zeros((W, H, 2 * C), dtype=jnp.float32)
    y = y.at[:, :split, :3].set(x_whc[:, :split, :])
    y = y.at[:, split:, 3:].set(x_whc[:, split:, :])
    y_chw = jnp.transpose(y, (2, 0, 1))                      # (6, W, H)
    return jnp.einsum("oc,cwh->owh", weight, y_chw) + bias[:, None, None]


if __name__ == "__main__":
    key = jax.random.PRNGKey(0)
    kx1, kx2, kw, kb = jax.random.split(key, 4)

    # Deterministic Conv2d(6 -> 3, kernel_size=1) params (PyTorch-style init,
    # fan_in = 6).
    bound = 1.0 / jnp.sqrt(6.0)
    weight = jax.random.uniform(kw, (3, 6), jnp.float32, -bound, bound)
    bias = jax.random.uniform(kb, (3,), jnp.float32, -bound, bound)

    # Small case (H < 128) -> flattened-lane fallback path, tiled along P (grid=2).
    W1, H1 = 16, 16
    x1 = jax.random.normal(kx1, (W1, H1, 3), dtype=jnp.float32)
    out1 = jax.block_until_ready(unet_front_conv_forward(x1, weight, bias, tile_p=128))
    ref1 = _reference(x1, weight, bias)
    assert out1.shape == (3, W1, H1)
    assert jnp.allclose(out1, ref1, atol=1e-5, rtol=1e-5)

    # Larger case (H multiple of 128) -> lane-dense (3, TILE_W, H) path (grid=4).
    W2, H2 = 128, 256
    x2 = jax.random.normal(kx2, (W2, H2, 3), dtype=jnp.float32)
    out2 = jax.block_until_ready(unet_front_conv_forward(x2, weight, bias, tile_w=32))
    ref2 = _reference(x2, weight, bias)
    assert out2.shape == (3, W2, H2)
    assert jnp.allclose(out2, ref2, atol=1e-5, rtol=1e-5)

    print("KERNEL_OK")
</pallas_src>

<mosaic_0001>
module attributes {stable_mosaic.version = 11 : i64} {
  func.func @_flat_kernel(%arg0: i32, %arg1: memref<3x128xf32, #tpu.memory_space<vmem>>, %arg2: memref<1x128xf32, #tpu.memory_space<vmem>>, %arg3: memref<3x6xf32, #tpu.memory_space<smem>>, %arg4: memref<3xf32, #tpu.memory_space<smem>>, %arg5: memref<3x128xf32, #tpu.memory_space<vmem>>) attributes {dimension_semantics = [#tpu.dimension_semantics<parallel>], iteration_bounds = array<i64: 2>, scalar_prefetch = 0 : i64, scratch_operands = 0 : i64, tpu.core_type = #tpu.core_type<tc>, window_params = [{transform_indices = @transform_0, window_bounds = array<i64: 3, 128>}, {transform_indices = @transform_1, window_bounds = array<i64: 1, 128>}, {transform_indices = @transform_2, window_bounds = array<i64: 3, 6>}, {transform_indices = @transform_3, window_bounds = array<i64: 3>}, {transform_indices = @transform_4, window_bounds = array<i64: 3, 128>}]} {
    %c0 = arith.constant 0 : index
    %c0_0 = arith.constant 0 : index
    %0 = vector.load %arg1[%c0, %c0_0] : memref<3x128xf32, #tpu.memory_space<vmem>>, vector<3x128xf32>
    %c0_1 = arith.constant 0 : index
    %c0_2 = arith.constant 0 : index
    %1 = vector.load %arg2[%c0_1, %c0_2] : memref<1x128xf32, #tpu.memory_space<vmem>>, vector<1x128xf32>
    %cst = arith.constant 1.000000e+00 : f32
    %2 = vector.broadcast %cst : f32 to vector<1x128xf32>
    %3 = arith.subf %2, %1 : vector<1x128xf32>
    %c0_3 = arith.constant 0 : index
    %c0_4 = arith.constant 0 : index
    %4 = memref.load %arg3[%c0_3, %c0_4] : memref<3x6xf32, #tpu.memory_space<smem>>
    %5 = vector.broadcast %4 : f32 to vector<1x128xf32>
    %6 = arith.mulf %5, %1 : vector<1x128xf32>
    %c0_5 = arith.constant 0 : index
    %c3 = arith.constant 3 : index
    %7 = memref.load %arg3[%c0_5, %c3] : memref<3x6xf32, #tpu.memory_space<smem>>
    %8 = vector.broadcast %7 : f32 to vector<1x128xf32>
    %9 = arith.mulf %8, %3 : vector<1x128xf32>
    %10 = arith.addf %6, %9 : vector<1x128xf32>
    %11 = vector.extract_strided_slice %0 {offsets = [0, 0], sizes = [1, 128], strides = [1, 1]} : vector<3x128xf32> to vector<1x128xf32>
    %12 = arith.mulf %11, %10 : vector<1x128xf32>
    %c0_6 = arith.constant 0 : index
    %c1 = arith.constant 1 : index
    %13 = memref.load %arg3[%c0_6, %c1] : memref<3x6xf32, #tpu.memory_space<smem>>
    %14 = vector.broadcast %13 : f32 to vector<1x128xf32>
    %15 = arith.mulf %14, %1 : vector<1x128xf32>
    %c0_7 = arith.constant 0 : index
    %c4 = arith.constant 4 : index
    %16 = memref.load %arg3[%c0_7, %c4] : memref<3x6xf32, #tpu.memory_space<smem>>
    %17 = vector.broadcast %16 : f32 to vector<1x128xf32>
    %18 = arith.mulf %17, %3 : vector<1x128xf32>
    %19 = arith.addf %15, %18 : vector<1x128xf32>
    %20 = vector.extract_strided_slice %0 {offsets = [1, 0], sizes = [1, 128], strides = [1, 1]} : vector<3x128xf32> to vector<1x128xf32>
    %21 = arith.mulf %20, %19 : vector<1x128xf32>
    %22 = arith.addf %12, %21 : vector<1x128xf32>
    %c0_8 = arith.constant 0 : index
    %c2 = arith.constant 2 : index
    %23 = memref.load %arg3[%c0_8, %c2] : memref<3x6xf32, #tpu.memory_space<smem>>
    %24 = vector.broadcast %23 : f32 to vector<1x128xf32>
    %25 = arith.mulf %24, %1 : vector<1x128xf32>
    %c0_9 = arith.constant 0 : index
    %c5 = arith.constant 5 : index
    %26 = memref.load %arg3[%c0_9, %c5] : memref<3x6xf32, #tpu.memory_space<smem>>
    %27 = vector.broadcast %26 : f32 to vector<1x128xf32>
    %28 = arith.mulf %27, %3 : vector<1x128xf32>
    %29 = arith.addf %25, %28 : vector<1x128xf32>
    %30 = vector.extract_strided_slice %0 {offsets = [2, 0], sizes = [1, 128], strides = [1, 1]} : vector<3x128xf32> to vector<1x128xf32>
    %31 = arith.mulf %30, %29 : vector<1x128xf32>
    %32 = arith.addf %22, %31 : vector<1x128xf32>
    %c0_10 = arith.constant 0 : index
    %33 = memref.load %arg4[%c0_10] : memref<3xf32, #tpu.memory_space<smem>>
    %34 = vector.broadcast %33 : f32 to vector<1x128xf32>
    %35 = arith.addf %32, %34 : vector<1x128xf32>
    %c1_11 = arith.constant 1 : index
    %c0_12 = arith.constant 0 : index
    %36 = memref.load %arg3[%c1_11, %c0_12] : memref<3x6xf32, #tpu.memory_space<smem>>
    %37 = vector.broadcast %36 : f32 to vector<1x128xf32>
    %38 = arith.mulf %37, %1 : vector<1x128xf32>
    %c1_13 = arith.constant 1 : index
    %c3_14 = arith.constant 3 : index
    %39 = memref.load %arg3[%c1_13, %c3_14] : memref<3x6xf32, #tpu.memory_space<smem>>
    %40 = vector.broadcast %39 : f32 to vector<1x128xf32>
    %41 = arith.mulf %40, %3 : vector<1x128xf32>
    %42 = arith.addf %38, %41 : vector<1x128xf32>
    %43 = vector.extract_strided_slice %0 {offsets = [0, 0], sizes = [1, 128], strides = [1, 1]} : vector<3x128xf32> to vector<1x128xf32>
    %44 = arith.mulf %43, %42 : vector<1x128xf32>
    %c1_15 = arith.constant 1 : index
    %c1_16 = arith.constant 1 : index
    %45 = memref.load %arg3[%c1_15, %c1_16] : memref<3x6xf32, #tpu.memory_space<smem>>
    %46 = vector.broadcast %45 : f32 to vector<1x128xf32>
    %47 = arith.mulf %46, %1 : vector<1x128xf32>
    %c1_17 = arith.constant 1 : index
    %c4_18 = arith.constant 4 : index
    %48 = memref.load %arg3[%c1_17, %c4_18] : memref<3x6xf32, #tpu.memory_space<smem>>
    %49 = vector.broadcast %48 : f32 to vector<1x128xf32>
    %50 = arith.mulf %49, %3 : vector<1x128xf32>
    %51 = arith.addf %47, %50 : vector<1x128xf32>
    %52 = vector.extract_strided_slice %0 {offsets = [1, 0], sizes = [1, 128], strides = [1, 1]} : vector<3x128xf32> to vector<1x128xf32>
    %53 = arith.mulf %52, %51 : vector<1x128xf32>
    %54 = arith.addf %44, %53 : vector<1x128xf32>
    %c1_19 = arith.constant 1 : index
    %c2_20 = arith.constant 2 : index
    %55 = memref.load %arg3[%c1_19, %c2_20] : memref<3x6xf32, #tpu.memory_space<smem>>
    %56 = vector.broadcast %55 : f32 to vector<1x128xf32>
    %57 = arith.mulf %56, %1 : vector<1x128xf32>
    %c1_21 = arith.constant 1 : index
    %c5_22 = arith.constant 5 : index
    %58 = memref.load %arg3[%c1_21, %c5_22] : memref<3x6xf32, #tpu.memory_space<smem>>
    %59 = vector.broadcast %58 : f32 to vector<1x128xf32>
    %60 = arith.mulf %59, %3 : vector<1x128xf32>
    %61 = arith.addf %57, %60 : vector<1x128xf32>
    %62 = vector.extract_strided_slice %0 {offsets = [2, 0], sizes = [1, 128], strides = [1, 1]} : vector<3x128xf32> to vector<1x128xf32>
    %63 = arith.mulf %62, %61 : vector<1x128xf32>
    %64 = arith.addf %54, %63 : vector<1x128xf32>
    %c1_23 = arith.constant 1 : index
    %65 = memref.load %arg4[%c1_23] : memref<3xf32, #tpu.memory_space<smem>>
    %66 = vector.broadcast %65 : f32 to vector<1x128xf32>
    %67 = arith.addf %64, %66 : vector<1x128xf32>
    %c2_24 = arith.constant 2 : index
    %c0_25 = arith.constant 0 : index
    %68 = memref.load %arg3[%c2_24, %c0_25] : memref<3x6xf32, #tpu.memory_space<smem>>
    %69 = vector.broadcast %68 : f32 to vector<1x128xf32>
    %70 = arith.mulf %69, %1 : vector<1x128xf32>
    %c2_26 = arith.constant 2 : index
    %c3_27 = arith.constant 3 : index
    %71 = memref.load %arg3[%c2_26, %c3_27] : memref<3x6xf32, #tpu.memory_space<smem>>
    %72 = vector.broadcast %71 : f32 to vector<1x128xf32>
    %73 = arith.mulf %72, %3 : vector<1x128xf32>
    %74 = arith.addf %70, %73 : vector<1x128xf32>
    %75 = vector.extract_strided_slice %0 {offsets = [0, 0], sizes = [1, 128], strides = [1, 1]} : vector<3x128xf32> to vector<1x128xf32>
    %76 = arith.mulf %75, %74 : vector<1x128xf32>
    %c2_28 = arith.constant 2 : index
    %c1_29 = arith.constant 1 : index
    %77 = memref.load %arg3[%c2_28, %c1_29] : memref<3x6xf32, #tpu.memory_space<smem>>
    %78 = vector.broadcast %77 : f32 to vector<1x128xf32>
    %79 = arith.mulf %78, %1 : vector<1x128xf32>
    %c2_30 = arith.constant 2 : index
    %c4_31 = arith.constant 4 : index
    %80 = memref.load %arg3[%c2_30, %c4_31] : memref<3x6xf32, #tpu.memory_space<smem>>
    %81 = vector.broadcast %80 : f32 to vector<1x128xf32>
    %82 = arith.mulf %81, %3 : vector<1x128xf32>
    %83 = arith.addf %79, %82 : vector<1x128xf32>
    %84 = vector.extract_strided_slice %0 {offsets = [1, 0], sizes = [1, 128], strides = [1, 1]} : vector<3x128xf32> to vector<1x128xf32>
    %85 = arith.mulf %84, %83 : vector<1x128xf32>
    %86 = arith.addf %76, %85 : vector<1x128xf32>
    %c2_32 = arith.constant 2 : index
    %c2_33 = arith.constant 2 : index
    %87 = memref.load %arg3[%c2_32, %c2_33] : memref<3x6xf32, #tpu.memory_space<smem>>
    %88 = vector.broadcast %87 : f32 to vector<1x128xf32>
    %89 = arith.mulf %88, %1 : vector<1x128xf32>
    %c2_34 = arith.constant 2 : index
    %c5_35 = arith.constant 5 : index
    %90 = memref.load %arg3[%c2_34, %c5_35] : memref<3x6xf32, #tpu.memory_space<smem>>
    %91 = vector.broadcast %90 : f32 to vector<1x128xf32>
    %92 = arith.mulf %91, %3 : vector<1x128xf32>
    %93 = arith.addf %89, %92 : vector<1x128xf32>
    %94 = vector.extract_strided_slice %0 {offsets = [2, 0], sizes = [1, 128], strides = [1, 1]} : vector<3x128xf32> to vector<1x128xf32>
    %95 = arith.mulf %94, %93 : vector<1x128xf32>
    %96 = arith.addf %86, %95 : vector<1x128xf32>
    %c2_36 = arith.constant 2 : index
    %97 = memref.load %arg4[%c2_36] : memref<3xf32, #tpu.memory_space<smem>>
    %98 = vector.broadcast %97 : f32 to vector<1x128xf32>
    %99 = arith.addf %96, %98 : vector<1x128xf32>
    %100 = tpu.concatenate %35, %67, %99 in 0 : vector<1x128xf32>, vector<1x128xf32>, vector<1x128xf32> -> vector<3x128xf32>
    %c0_37 = arith.constant 0 : index
    %c0_38 = arith.constant 0 : index
    %101 = vector.load %arg5[%c0_37, %c0_38] : memref<3x128xf32, #tpu.memory_space<vmem>>, vector<3x128xf32>
    tpu.vector_store %arg5[%c0_37, %c0_38], %100 {strides = array<i32>} : memref<3x128xf32, #tpu.memory_space<vmem>>, vector<3x128xf32>,
    return
  }
  func.func @transform_0(%arg0: i32) -> (i32, i32) {
    %c0_i32 = arith.constant 0 : i32
    %c0_i32_0 = arith.constant 0 : i32
    return %c0_i32, %arg0 : i32, i32
  }
  func.func @transform_1(%arg0: i32) -> (i32, i32) {
    %c0_i32 = arith.constant 0 : i32
    %c0_i32_0 = arith.constant 0 : i32
    return %c0_i32, %arg0 : i32, i32
  }
  func.func @transform_2(%arg0: i32) -> (i32, i32) {
    %c0_i32 = arith.constant 0 : i32
    %c0_i32_0 = arith.constant 0 : i32
    %c0_i32_1 = arith.constant 0 : i32
    return %c0_i32, %c0_i32_0 : i32, i32
  }
  func.func @transform_3(%arg0: i32) -> i32 {
    %c0_i32 = arith.constant 0 : i32
    %c0_i32_0 = arith.constant 0 : i32
    return %c0_i32 : i32
  }
  func.func @transform_4(%arg0: i32) -> (i32, i32) {
    %c0_i32 = arith.constant 0 : i32
    %c0_i32_0 = arith.constant 0 : i32
    return %c0_i32, %arg0 : i32, i32
  }
}

</mosaic_0001>

<llo_original>
// kernel: tpu_custom_call.1
$region0: #{tpu_custom_call.1}
  #allocation0 [shape = 'u32[]', space=smem, size = 0x4, offset = 0x4, fixed_abs, tag = 'smem constant byte address 0x4 - core index']
  #allocation1 [shape = 'u32[144,128]{1,0:T(1,128)}', space=vmem, size = 0x12000, scoped, tag = 'internal scratch']
  %s0 = inlined_call_operand.hbm [shape: f32[3,256], index: 0, kind: input, shape index: {}]
  %s1 = inlined_call_operand.hbm [shape: f32[1,256], index: 1, kind: input, shape index: {}]
  %s2 = inlined_call_operand.hbm [shape: f32[3,6], index: 2, kind: input, shape index: {}]
  %s3 = inlined_call_operand.vmem [shape: f32[3], index: 3, kind: input, shape index: {}]
  %s4 = inlined_call_operand.hbm [shape: f32[3,256], index: 4, kind: output, shape index: {}]
  %s5 = sld [smem:[#allocation0]]
  $region65: #{tpu_custom_call.1} parent=0
    _
  %s7 = ssub.s32 1, %s5
  %s8 = scalar_select 0, %s7, %s5
  $region1: #{tpu_custom_call.1} parent=0
    #allocation2 [shape = 'u8[4096]{0}', space=vmem, size = 0x1000, scoped, tag = 'input window, operand 0']
    #allocation3 [shape = 's32[2]{0}', space=sflag, size = 0x8, scoped, tag = 'scoped memory for tpu_custom_call.1']
    #allocation4 [shape = 's32[2]{0}', space=sflag, size = 0x8, scoped, tag = 'scoped memory for tpu_custom_call.1']
    #allocation5 [shape = 's32[2]{0}', space=sflag, size = 0x8, scoped, tag = 'scoped memory for tpu_custom_call.1']
    #allocation6 [shape = 's32[2]{0}', space=sflag, size = 0x8, scoped, tag = 'scoped memory for tpu_custom_call.1']
    #allocation7 [shape = 'u8[1024]{0}', space=vmem, size = 0x400, scoped, tag = 'input window, operand 1']
    #allocation8 [shape = 's32[2]{0}', space=sflag, size = 0x8, scoped, tag = 'scoped memory for tpu_custom_call.1']
    #allocation9 [shape = 'u8[2048]{0}', space=smem, size = 0x800, scoped, tag = 'input window, operand 2, single buffered']
    #allocation10 [shape = 'u8[512]{0}', space=smem, size = 0x200, scoped, tag = 'input window, operand 3, single buffered']
    #allocation11 [shape = 'u8[4096]{0}', space=vmem, size = 0x1000, scoped, tag = 'output window, operand 0']
    %9 = vsyncpa [#allocation3], 0
    %s10 = scalar_lea.sflag [#allocation3], 1
    %11 = vsyncpa %s10, 0
    %12 = vsyncpa [#allocation8], 0
    %s13 = scalar_lea.sflag [#allocation8], 1
    %14 = vsyncpa %s13, 0
    %15 = vsyncpa [#allocation5], 0
    %16 = vsyncpa [#allocation6], 0
    %17 = vsyncpa [#allocation4], 0
    %s18 = scalar_lea.sflag [#allocation4], 1
    %19 = vsyncpa %s18, 0
    loop: start=0, step=1, limit=4
    $region2: #{tpu_custom_call.1} parent=1 // loop_pre_header
      _
    $region3: #{tpu_custom_call.1} parent=1 // loop_header
      %s21 = sphi 0, %s25
      %p22 = scmp.ge.s32.totalorder %s21, 4
      %s31 = sphi 0, %s33
      %s34 = sphi 0, %s31
      %s35 = sphi 0, %s34
      %s51 = sphi 0, %s35
      %s57 = sphi 0, %s59
      %s60 = sphi 0, %s57
      %s61 = sphi 0, %s60
      %s77 = sphi 0, %s61
      %s81 = sphi 0, %s81
      %s83 = sphi 0, %s81
      %s84 = sphi 0, %s83
      %s98 = sphi 0, %s84
      %s102 = sphi 0, %s102
      %s104 = sphi 0, %s102
      %s105 = sphi 0, %s104
      %s119 = sphi 0, %s105
      %s125 = sphi 0, %s127
      %s128 = sphi 0, %s125
      %s129 = sphi 0, %s128
      %s145 = sphi 0, %s129
    $region4: #{tpu_custom_call.1} parent=1 // loop_header_branch
      %24 = sbr.rel (%p22) target = $region8
    $region5: #{tpu_custom_call.1} parent=1 // loop_body
      %s26 = ssub.s32 %s21, 1
      %s27 = ssub.s32 %s21, 2
      %s28 = sadd.s32 %s21, 1
      %s29 = ssub.s32 %s21, %s28
      %p30 = scmp.eq.s32.totalorder %s29, 0
      %s32 = sadd.s32 %s31, 1
      %s33 = scalar_select %p30, %s31, %s32
      %p36 = pneg %p30
      %p37 = scmp.eq.s32.totalorder %s21, 1
      %p38 = por %p36, %p37
      %p39 = scmp.ne.s32.totalorder %s31, %s34
      %p40 = scmp.eq.s32.totalorder %s21, 0
      %p41 = por %p39, %p40
      %p42 = scmp.ne.s32.totalorder %s31, %s34
      %p43 = scmp.eq.s32.totalorder %s26, 1
      %p44 = por %p42, %p43
      %p45 = scmp.ne.s32.totalorder %s34, %s35
      %p46 = scmp.eq.s32.totalorder %s26, 0
      %p47 = por %p45, %p46
      %p48 = scmp.ne.s32.totalorder %s34, %s35
      %p49 = scmp.eq.s32.totalorder %s27, 1
      %p50 = por %p48, %p49
      %p52 = scmp.ne.s32.totalorder %s35, %s51
      %p53 = scmp.eq.s32.totalorder %s27, 0
      %p54 = por %p52, %p53
      %s55 = ssub.s32 %s21, %s28
      %p56 = scmp.eq.s32.totalorder %s55, 0
      %s58 = sadd.s32 %s57, 1
      %s59 = scalar_select %p56, %s57, %s58
      %p62 = pneg %p56
      %p63 = scmp.eq.s32.totalorder %s21, 1
      %p64 = por %p62, %p63
      %p65 = scmp.ne.s32.totalorder %s57, %s60
      %p66 = scmp.eq.s32.totalorder %s21, 0
      %p67 = por %p65, %p66
      %p68 = scmp.ne.s32.totalorder %s57, %s60
      %p69 = scmp.eq.s32.totalorder %s26, 1
      %p70 = por %p68, %p69
      %p71 = scmp.ne.s32.totalorder %s60, %s61
      %p72 = scmp.eq.s32.totalorder %s26, 0
      %p73 = por %p71, %p72
      %p74 = scmp.ne.s32.totalorder %s60, %s61
      %p75 = scmp.eq.s32.totalorder %s27, 1
      %p76 = por %p74, %p75
      %p78 = scmp.ne.s32.totalorder %s61, %s77
      %p79 = scmp.eq.s32.totalorder %s27, 0
      %p80 = por %p78, %p79
      %s82 = sadd.s32 %s81, 1
      %p85 = scmp.eq.s32.totalorder %s21, 1
      %p86 = scmp.ne.s32.totalorder %s81, %s83
      %p87 = scmp.eq.s32.totalorder %s21, 0
      %p88 = por %p86, %p87
      %p89 = scmp.ne.s32.totalorder %s81, %s83
      %p90 = scmp.eq.s32.totalorder %s26, 1
      %p91 = por %p89, %p90
      %p92 = scmp.ne.s32.totalorder %s83, %s84
      %p93 = scmp.eq.s32.totalorder %s26, 0
      %p94 = por %p92, %p93
      %p95 = scmp.ne.s32.totalorder %s83, %s84
      %p96 = scmp.eq.s32.totalorder %s27, 1
      %p97 = por %p95, %p96
      %p99 = scmp.ne.s32.totalorder %s84, %s98
      %p100 = scmp.eq.s32.totalorder %s27, 0
      %p101 = por %p99, %p100
      %s103 = sadd.s32 %s102, 1
      %p106 = scmp.eq.s32.totalorder %s21, 1
      %p107 = scmp.ne.s32.totalorder %s102, %s104
      %p108 = scmp.eq.s32.totalorder %s21, 0
      %p109 = por %p107, %p108
      %p110 = scmp.ne.s32.totalorder %s102, %s104
      %p111 = scmp.eq.s32.totalorder %s26, 1
      %p112 = por %p110, %p111
      %p113 = scmp.ne.s32.totalorder %s104, %s105
      %p114 = scmp.eq.s32.totalorder %s26, 0
      %p115 = por %p113, %p114
      %p116 = scmp.ne.s32.totalorder %s104, %s105
      %p117 = scmp.eq.s32.totalorder %s27, 1
      %p118 = por %p116, %p117
      %p120 = scmp.ne.s32.totalorder %s105, %s119
      %p121 = scmp.eq.s32.totalorder %s27, 0
      %p122 = por %p120, %p121
      %s123 = ssub.s32 %s21, %s28
      %p124 = scmp.eq.s32.totalorder %s123, 0
      %s126 = sadd.s32 %s125, 1
      %s127 = scalar_select %p124, %s125, %s126
      %p130 = pneg %p124
      %p131 = scmp.eq.s32.totalorder %s21, 1
      %p132 = por %p130, %p131
      %p133 = scmp.ne.s32.totalorder %s125, %s128
      %p134 = scmp.eq.s32.totalorder %s21, 0
      %p135 = por %p133, %p134
      %p136 = scmp.ne.s32.totalorder %s125, %s128
      %p137 = scmp.eq.s32.totalorder %s26, 1
      %p138 = por %p136, %p137
      %p139 = scmp.ne.s32.totalorder %s128, %s129
      %p140 = scmp.eq.s32.totalorder %s26, 0
      %p141 = por %p139, %p140
      %p142 = scmp.ne.s32.totalorder %s128, %s129
      %p143 = scmp.eq.s32.totalorder %s27, 1
      %p144 = por %p142, %p143
      %p146 = scmp.ne.s32.totalorder %s129, %s145
      %p147 = scmp.eq.s32.totalorder %s27, 0
      %p148 = por %p146, %p147
      %p149 = scmp.le.s32.totalorder 1, %s21
      %p150 = scmp.lt.s32.totalorder %s21, 3
      %p151 = pnand %p149, %p150
      %p152 = pneg %p151
      // Predicated region
      $region9: #{tpu_custom_call.1} parent=5 // pred_check
        _
      $region10: #{tpu_custom_call.1} parent=5 // pred_check_branch
        %154 = sbr.rel (%p151) target = $region12
      $region11: #{tpu_custom_call.1} parent=5 // pred_region
        %s155 = ssub.s32 %s21, 1
        // Predicated region
        $region13: #{tpu_custom_call.1} parent=11 // pred_check
          %p156 = pneg %p94
        $region14: #{tpu_custom_call.1} parent=11 // pred_check_branch
          %158 = sbr.rel (%p156) target = $region16
        $region15: #{tpu_custom_call.1} parent=11 // pred_region
          %s160 = ssub.s32 64, 64
          %161 = vsyncadd [#allocation5], %s160
          %164 = dma.hbm_to_smem %s2, 64, [#allocation9], [#allocation5]
        $region16: #{tpu_custom_call.1} parent=11 // pred_fallthru
          _
        // Predicated region
        $region17: #{tpu_custom_call.1} parent=11 // pred_check
          %p165 = pneg %p115
        $region18: #{tpu_custom_call.1} parent=11 // pred_check_branch
          %167 = sbr.rel (%p165) target = $region20
        $region19: #{tpu_custom_call.1} parent=11 // pred_region
          %s169 = ssub.s32 16, 16
          %170 = vsyncadd [#allocation6], %s169
          %s172 = sshll.u32 %s3, 4
          %s173 = int_to_ptr.vmem [resolvable:$true] %s172
          %175 = dma.vmem_to_smem %s173, 16, [#allocation10], [#allocation6]
        $region20: #{tpu_custom_call.1} parent=11 // pred_fallthru
          _
      $region12: #{tpu_custom_call.1} parent=5 // pred_fallthru
        _
      %p176 = scmp.lt.s32.totalorder %s21, 2
      // Predicated region
      $region21: #{tpu_custom_call.1} parent=5 // pred_check
        %p177 = pneg %p176
      $region22: #{tpu_custom_call.1} parent=5 // pred_check_branch
        %179 = sbr.rel (%p177) target = $region24
      $region23: #{tpu_custom_call.1} parent=5 // pred_region
        // Predicated region
        $region25: #{tpu_custom_call.1} parent=23 // pred_check
          %p180 = pneg %p41
        $region26: #{tpu_custom_call.1} parent=23 // pred_check_branch
          %182 = sbr.rel (%p180) target = $region28
        $region27: #{tpu_custom_call.1} parent=23 // pred_region
          %s183 = sand.u32 %s31, 1
          %s184 = scalar_lea.sflag [#allocation3], %s183
          %s185 = sand.u32 %s31, 1
          %s186 = smul.addr %s185, 4
          %s187 = scalar_lea.vmem [#allocation2], %s186
          %s189 = ssub.s32 64, 64
          %190 = vsyncadd %s184, %s189
          %s191 = smul.addr %s21, 64
          %s192 = scalar_lea.hbm %s0, %s191
          %s194 = sshll.u32 %s187, 4
          %s195 = int_to_ptr.vmem [resolvable:$true] %s194
          %197 = dma.hbm_to_vmem [thread:$0]  %s192, 64, %s195, %s184
        $region28: #{tpu_custom_call.1} parent=23 // pred_fallthru
          _
        // Predicated region
        $region29: #{tpu_custom_call.1} parent=23 // pred_check
          %p198 = pneg %p67
        $region30: #{tpu_custom_call.1} parent=23 // pred_check_branch
          %200 = sbr.rel (%p198) target = $region32
        $region31: #{tpu_custom_call.1} parent=23 // pred_region
          %s201 = sand.u32 %s57, 1
          %s202 = scalar_lea.sflag [#allocation8], %s201
          %s203 = sand.u32 %s57, 1
          %s204 = scalar_lea.vmem [#allocation7], %s203
          %s206 = ssub.s32 16, 16
          %207 = vsyncadd %s202, %s206
          %s208 = smul.addr %s21, 16
          %s209 = scalar_lea.hbm %s1, %s208
          %s211 = sshll.u32 %s204, 4
          %s212 = int_to_ptr.vmem [resolvable:$true] %s211
          %214 = dma.hbm_to_vmem [thread:$0]  %s209, 16, %s212, %s202
        $region32: #{tpu_custom_call.1} parent=23 // pred_fallthru
          _
      $region24: #{tpu_custom_call.1} parent=5 // pred_fallthru
        _
      %p215 = scmp.le.s32.totalorder 1, %s21
      %p216 = scmp.lt.s32.totalorder %s21, 3
      %p217 = pnand %p215, %p216
      %p218 = pneg %p217
      // Predicated region
      $region33: #{tpu_custom_call.1} parent=5 // pred_check
        _
      $region34: #{tpu_custom_call.1} parent=5 // pred_check_branch
        %220 = sbr.rel (%p217) target = $region36
      $region35: #{tpu_custom_call.1} parent=5 // pred_region
        %s221 = ssub.s32 %s21, 1
        %s222 = sand.u32 %s34, 1
        %s223 = scalar_lea.sflag [#allocation3], %s222
        %s224 = sand.u32 %s34, 1
        %s225 = smul.addr %s224, 4
        %s226 = scalar_lea.vmem [#allocation2], %s225
        // Predicated region
        $region37: #{tpu_custom_call.1} parent=35 // pred_check
          %p227 = pneg %p47
        $region38: #{tpu_custom_call.1} parent=35 // pred_check_branch
          %229 = sbr.rel (%p227) target = $region40
        $region39: #{tpu_custom_call.1} parent=35 // pred_region
          %230 = dma.done %s223, 64
        $region40: #{tpu_custom_call.1} parent=35 // pred_fallthru
          _
        %s231 = sand.u32 %s60, 1
        %s232 = scalar_lea.sflag [#allocation8], %s231
        %s233 = sand.u32 %s60, 1
        %s234 = scalar_lea.vmem [#allocation7], %s233
        // Predicated region
        $region41: #{tpu_custom_call.1} parent=35 // pred_check
          %p235 = pneg %p73
        $region42: #{tpu_custom_call.1} parent=35 // pred_check_branch
          %237 = sbr.rel (%p235) target = $region44
        $region43: #{tpu_custom_call.1} parent=35 // pred_region
          %238 = dma.done %s232, 16
        $region44: #{tpu_custom_call.1} parent=35 // pred_fallthru
          _
        // Predicated region
        $region45: #{tpu_custom_call.1} parent=35 // pred_check
          %p239 = pneg %p94
        $region46: #{tpu_custom_call.1} parent=35 // pred_check_branch
          %241 = sbr.rel (%p239) target = $region48
        $region47: #{tpu_custom_call.1} parent=35 // pred_region
          %242 = dma.done [#allocation5], 64
        $region48: #{tpu_custom_call.1} parent=35 // pred_fallthru
          _
        // Predicated region
        $region49: #{tpu_custom_call.1} parent=35 // pred_check
          %p243 = pneg %p115
        $region50: #{tpu_custom_call.1} parent=35 // pred_check_branch
          %245 = sbr.rel (%p243) target = $region52
        $region51: #{tpu_custom_call.1} parent=35 // pred_region
          %246 = dma.done [#allocation6], 16
        $region52: #{tpu_custom_call.1} parent=35 // pred_fallthru
          _
        %247 = sfence
        %s248 = sand.u32 %s34, 1
        %s249 = scalar_lea.sflag [#allocation3], %s248
        %s250 = sand.u32 %s34, 1
        %s251 = smul.addr %s250, 4
        %s252 = scalar_lea.vmem [#allocation2], %s251
        %p253 = pneg %p47
        %p254 = pneg %p44
        %s255 = sand.u32 %s60, 1
        %s256 = scalar_lea.sflag [#allocation8], %s255
        %s257 = sand.u32 %s60, 1
        %s258 = scalar_lea.vmem [#allocation7], %s257
        %p259 = pneg %p73
        %p260 = pneg %p70
        %p261 = pneg %p94
        %p262 = pneg %p91
        %p263 = pneg %p115
        %p264 = pneg %p112
        %p265 = pneg %p141
        %p266 = pneg %p138
        %s267 = sand.u32 %s128, 1
        %s268 = scalar_lea.sflag [#allocation4], %s267
        %s269 = sand.u32 %s128, 1
        %s270 = smul.addr %s269, 4
        %s271 = scalar_lea.vmem [#allocation11], %s270
        %v272 = vld [vmem:[%s226] sm:$0x7]
        %v273 = vld [vmem:[%s234] sm:$0x1]
        %v274 = vsub.f32 1.0, %v273
        %s275 = sld [smem:[#allocation9]]
        %v276 = vstv %s275
        %v277 = vmul.f32 %v276, %v273
        %s278 = sld [smem:[#allocation9 + $0x3]]
        %v279 = vstv %s278
        %v280 = vmul.f32 %v279, %v274
        %v281 = vadd.f32 %v277, %v280
        %v282 = vmul.f32 %v272, %v281
        %s283 = sld [smem:[#allocation9 + $0x1]]
        %v284 = vstv %s283
        %v285 = vmul.f32 %v284, %v273
        %s286 = sld [smem:[#allocation9 + $0x4]]
        %v287 = vstv %s286
        %v288 = vmul.f32 %v287, %v274
        %v289 = vadd.f32 %v285, %v288
        %v291 = vlaneseq
        %v292 = vshrl.u32 %v291, 7
        %v293 = vsub.s32 0, %v292
        %v294 = vrot.slane %v289, %v293
        %v296 = vmul.f32 %v272, %v294
        %v298 = vrot.slane %v296, 1
        %v300 = vadd.f32 %v282, %v298
        %s301 = sld [smem:[#allocation9 + $0x2]]
        %v302 = vstv %s301
        %v303 = vmul.f32 %v302, %v273
        %s304 = sld [smem:[#allocation9 + $0x5]]
        %v305 = vstv %s304
        %v306 = vmul.f32 %v305, %v274
        %v307 = vadd.f32 %v303, %v306
        %v309 = vlaneseq
        %v310 = vshrl.u32 %v309, 7
        %v311 = vsub.s32 0, %v310
        %v312 = vrot.slane %v307, %v311
        %v314 = vmul.f32 %v272, %v312
        %v316 = vrot.slane %v314, 2
        %v318 = vadd.f32 %v300, %v316
        %s319 = sld [smem:[#allocation10]]
        %v320 = vstv %s319
        %v321 = vadd.f32 %v318, %v320
        %s322 = sld [smem:[#allocation9 + $0x80]]
        %v323 = vstv %s322
        %v324 = vmul.f32 %v323, %v273
        %s325 = sld [smem:[#allocation9 + $0x83]]
        %v326 = vstv %s325
        %v327 = vmul.f32 %v326, %v274
        %v328 = vadd.f32 %v324, %v327
        %v329 = vmul.f32 %v272, %v328
        %s330 = sld [smem:[#allocation9 + $0x81]]
        %v331 = vstv %s330
        %v332 = vmul.f32 %v331, %v273
        %s333 = sld [smem:[#allocation9 + $0x84]]
        %v334 = vstv %s333
        %v335 = vmul.f32 %v334, %v274
        %v336 = vadd.f32 %v332, %v335
        %v338 = vlaneseq
        %v339 = vshrl.u32 %v338, 7
        %v340 = vsub.s32 0, %v339
        %v341 = vrot.slane %v336, %v340
        %v343 = vmul.f32 %v272, %v341
        %v345 = vrot.slane %v343, 1
        %v347 = vadd.f32 %v329, %v345
        %s348 = sld [smem:[#allocation9 + $0x82]]
        %v349 = vstv %s348
        %v350 = vmul.f32 %v349, %v273
        %s351 = sld [smem:[#allocation9 + $0x85]]
        %v352 = vstv %s351
        %v353 = vmul.f32 %v352, %v274
        %v354 = vadd.f32 %v350, %v353
        %v356 = vlaneseq
        %v357 = vshrl.u32 %v356, 7
        %v358 = vsub.s32 0, %v357
        %v359 = vrot.slane %v354, %v358
        %v361 = vmul.f32 %v272, %v359
        %v363 = vrot.slane %v361, 2
        %v365 = vadd.f32 %v347, %v363
        %s366 = sld [smem:[#allocation10 + $0x1]]
        %v367 = vstv %s366
        %v368 = vadd.f32 %v365, %v367
        %s369 = sld [smem:[#allocation9 + $0x100]]
        %v370 = vstv %s369
        %v371 = vmul.f32 %v370, %v273
        %s372 = sld [smem:[#allocation9 + $0x103]]
        %v373 = vstv %s372
        %v374 = vmul.f32 %v373, %v274
        %v375 = vadd.f32 %v371, %v374
        %v376 = vmul.f32 %v272, %v375
        %s377 = sld [smem:[#allocation9 + $0x101]]
        %v378 = vstv %s377
        %v379 = vmul.f32 %v378, %v273
        %s380 = sld [smem:[#allocation9 + $0x104]]
        %v381 = vstv %s380
        %v382 = vmul.f32 %v381, %v274
        %v383 = vadd.f32 %v379, %v382
        %v385 = vlaneseq
        %v386 = vshrl.u32 %v385, 7
        %v387 = vsub.s32 0, %v386
        %v388 = vrot.slane %v383, %v387
        %v390 = vmul.f32 %v272, %v388
        %v392 = vrot.slane %v390, 1
        %v394 = vadd.f32 %v376, %v392
        %s395 = sld [smem:[#allocation9 + $0x102]]
        %v396 = vstv %s395
        %v397 = vmul.f32 %v396, %v273
        %s398 = sld [smem:[#allocation9 + $0x105]]
        %v399 = vstv %s398
        %v400 = vmul.f32 %v399, %v274
        %v401 = vadd.f32 %v397, %v400
        %v403 = vlaneseq
        %v404 = vshrl.u32 %v403, 7
        %v405 = vsub.s32 0, %v404
        %v406 = vrot.slane %v401, %v405
        %v408 = vmul.f32 %v272, %v406
        %v410 = vrot.slane %v408, 2
        %v412 = vadd.f32 %v394, %v410
        %s413 = sld [smem:[#allocation10 + $0x2]]
        %v414 = vstv %s413
        %v415 = vadd.f32 %v412, %v414
        %v417 = vrot.slane %v368, 7
        %v420 = vrot.slane %v415, 6
        %vm422 = vcmask 1040384
        %v423 = vsel %vm422, %v321, %v417
        %vm424 = vcmask 1041408
        %v425 = vsel %vm424, %v423, %v420
        %426 = vst [vmem:[%s271] sm:$0x7] %v425
        %s427 = sand.u32 %s128, 1
        %s428 = scalar_lea.sflag [#allocation4], %s427
        %s429 = sand.u32 %s128, 1
        %s430 = smul.addr %s429, 4
        %s431 = scalar_lea.vmem [#allocation11], %s430
        // Predicated region
        $region53: #{tpu_custom_call.1} parent=35 // pred_check
          %p432 = pneg %p138
        $region54: #{tpu_custom_call.1} parent=35 // pred_check_branch
          %434 = sbr.rel (%p432) target = $region56
        $region55: #{tpu_custom_call.1} parent=35 // pred_region
          %s436 = ssub.s32 64, 64
          %437 = vsyncadd %s428, %s436
          %s438 = smul.addr %s26, 64
          %s439 = scalar_lea.hbm %s4, %s438
          %s441 = sshll.u32 %s431, 4
          %s442 = int_to_ptr.vmem [resolvable:$true] %s441
          %444 = dma.vmem_to_hbm [thread:$0]  %s442, 64, %s439, %s428
        $region56: #{tpu_custom_call.1} parent=35 // pred_fallthru
          _
      $region36: #{tpu_custom_call.1} parent=5 // pred_fallthru
        _
      %p445 = scmp.le.s32.totalorder 2, %s21
      // Predicated region
      $region57: #{tpu_custom_call.1} parent=5 // pred_check
        %p446 = pneg %p445
      $region58: #{tpu_custom_call.1} parent=5 // pred_check_branch
        %448 = sbr.rel (%p446) target = $region60
      $region59: #{tpu_custom_call.1} parent=5 // pred_region
        %s449 = ssub.s32 %s21, 2
        // Predicated region
        $region61: #{tpu_custom_call.1} parent=59 // pred_check
          %p450 = pneg %p144
        $region62: #{tpu_custom_call.1} parent=59 // pred_check_branch
          %452 = sbr.rel (%p450) target = $region64
        $region63: #{tpu_custom_call.1} parent=59 // pred_region
          %s453 = sand.u32 %s129, 1
          %s454 = scalar_lea.sflag [#allocation4], %s453
          %s455 = sand.u32 %s129, 1
          %s456 = smul.addr %s455, 4
          %s457 = scalar_lea.vmem [#allocation11], %s456
          %458 = dma.done %s454, 64
        $region64: #{tpu_custom_call.1} parent=59 // pred_fallthru
          _
      $region60: #{tpu_custom_call.1} parent=5 // pred_fallthru
        _
    $region6: #{tpu_custom_call.1} parent=1 // loop_footer
      %s25 = sadd.s32 1, %s21
    $region7: #{tpu_custom_call.1} parent=1 // loop_footer_branch
      %20 = sbr.rel target = $region3
    $region8: #{tpu_custom_call.1} parent=1 // loop_exit
      _
    %459 = vsyncpa [#allocation3], 1
    %s460 = scalar_lea.sflag [#allocation3], 1
    %461 = vsyncpa %s460, 1
    %462 = vsyncpa [#allocation8], 1
    %s463 = scalar_lea.sflag [#allocation8], 1
    %464 = vsyncpa %s463, 1
    %465 = vsyncpa [#allocation4], 1
    %s466 = scalar_lea.sflag [#allocation4], 1
    %467 = vsyncpa %s466, 1
    %468 = vsyncpa [#allocation5], 1
    %s469 = scalar_lea.sflag [#allocation5], 1
    %470 = vsyncpa %s469, 1
    %471 = vsyncpa [#allocation6], 1
    %s472 = scalar_lea.sflag [#allocation6], 1
    %473 = vsyncpa %s472, 1

</llo_original>
